<compile_context>
chip_gen: v7x
topology: tpu7x:2x2x1
jax: 0.10.0
libtpu: 0.0.40
codegen_flags: <defaults>
</compile_context>

<pallas_src>
import math

import numpy as np
import jax
import jax.numpy as jnp
from jax.experimental import pallas as pl
from jax.experimental.pallas import tpu as pltpu


def _pos_enc_kernel(consts_ref, s_lo_ref, c_lo_ref, o_ref):
    """Fill one (tile, W) slab of the (lane-packed) table.

    consts_ref : (2, W) f32   row 0 = scale (pack * 10000**(-2*(j//2)/D)),
                              row 1 = bias  (pos_off * inv + (j%2)*pi/2)
    s_lo_ref   : (tile, W) f32  sin(local_r * scale)   (precomputed basis)
    c_lo_ref   : (tile, W) f32  cos(local_r * scale)   (precomputed basis)

    out[r, l] = sin((row0 + r) * scale[l] + bias[l])
              = s_lo[r, l] * cos(hi[l]) + c_lo[r, l] * sin(hi[l])
    with hi = row0 * scale + bias (a (1, W) vector -> only 2*W transcendentals
    per grid step; per-element work is 2 mul + 1 add + cast).
    """
    tile = o_ref.shape[0]
    consts = consts_ref[...]                       # (2, W)
    scale = consts[0:1, :]                         # (1, W)
    bias = consts[1:2, :]                          # (1, W)

    row0 = (pl.program_id(0) * tile).astype(jnp.float32)
    hi = row0 * scale + bias                       # (1, W) per-step angle offset
    s_hi = jnp.sin(hi)
    c_hi = jnp.cos(hi)

    o_ref[...] = (s_lo_ref[...] * c_hi + c_lo_ref[...] * s_hi).astype(o_ref.dtype)


def _pick_tile(rows_total: int, W: int, seq_tile):
    """Sublane-aligned block height; ~4 MiB of f32 rows; >=4 grid steps when possible."""
    if seq_tile is not None:
        tile = max(1, min(int(seq_tile), rows_total))
    else:
        tile = min(rows_total, max(8, (4 << 20) // (W * 4)))
        # v7x megacore: two TensorCores share the 'parallel' axis; keep >= 2
        # blocks per core so the output write-back overlaps the next block.
        if rows_total >= 32 and pl.cdiv(rows_total, tile) < 4:
            tile = max(8, (pl.cdiv(rows_total, 4) // 8) * 8)
    if tile != rows_total:
        tile = max(8, (tile // 8) * 8)             # sublane-aligned blocks
        if tile >= rows_total:
            tile = rows_total                      # full-extent block is always legal
    return tile


def make_pos_encoding(max_seq_len: int, d_word_vec: int,
                      dtype=jnp.float32, seq_tile: int | None = None):
    """Returns a callable mimicking PosEncoding.forward(ifnot)."""
    D = int(d_word_vec)

    # ---- lane-dense packed layout -------------------------------------------
    # If D is not a multiple of 128, pack `pack` consecutive positions into one
    # W = lcm(D, 128) lane row so every store uses full lanes.  Row-major
    # flatten of (rows_total, W) is exactly (pos, j) row-major; if max_seq_len
    # does not divide by `pack` we pad rows and slice in the wrapper.
    if D % 128 == 0:
        W, pack = D, 1
    else:
        W = (D * 128) // math.gcd(D, 128)          # lcm(D, 128)
        pack = W // D
    rows_total = pl.cdiv(max_seq_len, pack)
    padded_seq = rows_total * pack

    tile = _pick_tile(rows_total, W, seq_tile)
    grid = (pl.cdiv(rows_total, tile),)

    # ---- host-side (float64) per-lane constants and sin/cos basis ------------
    lane = np.arange(W)
    j = lane % D                                    # feature index of each lane
    pos_off = lane // D                             # position offset inside packed row
    inv = np.power(10000.0, -2.0 * (j // 2) / D)    # uses the FULL d_word_vec
    phase = (j % 2) * (np.pi / 2.0)                 # cos(x) == sin(x + pi/2)
    scale64 = pack * inv                            # (W,)
    bias64 = pos_off * inv + phase                  # (W,)
    consts_c = jnp.asarray(np.stack([scale64, bias64]).astype(np.float32))  # (2, W)

    lo = np.arange(tile, dtype=np.float64).reshape(tile, 1) * scale64.reshape(1, W)
    s_lo_c = jnp.asarray(np.sin(lo).astype(np.float32))    # (tile, W)
    c_lo_c = jnp.asarray(np.cos(lo).astype(np.float32))    # (tile, W)

    table_fn = pl.pallas_call(
        _pos_enc_kernel,
        out_shape=jax.ShapeDtypeStruct((rows_total, W), dtype),
        grid_spec=pltpu.PrefetchScalarGridSpec(
            num_scalar_prefetch=0,
            grid=grid,
            in_specs=[
                pl.BlockSpec((2, W), lambda i: (0, 0)),        # scale/bias consts
                pl.BlockSpec((tile, W), lambda i: (0, 0)),     # sin basis (DMA'd once)
                pl.BlockSpec((tile, W), lambda i: (0, 0)),     # cos basis (DMA'd once)
            ],
            out_specs=pl.BlockSpec((tile, W), lambda i: (i, 0)),
        ),
        compiler_params=pltpu.CompilerParams(
            dimension_semantics=("parallel",),
            vmem_limit_bytes=32 << 20,              # safe on v5e/v6e/v7x
        ),
    )

    def _build():
        out = table_fn(consts_c, s_lo_c, c_lo_c)    # (rows_total, W)
        out = out.reshape(padded_seq, D)            # row-major identical layout
        if padded_seq != max_seq_len:
            out = out[:max_seq_len]                 # drop packed-row padding
        return out

    cache = {}

    def forward(ifnot):
        # Python-level gate, exactly like the PyTorch module (None otherwise).
        if ifnot:
            if "table" not in cache:
                cache["table"] = _build()           # constant table: build once
            return cache["table"]
        return None

    return forward


def _numpy_reference(max_seq_len, d_word_vec):
    pos_enc = np.array(
        [[pos / np.power(10000, 2.0 * (j // 2) / d_word_vec) for j in range(d_word_vec)]
         for pos in range(max_seq_len)]
    )
    pos_enc[:, 0::2] = np.sin(pos_enc[:, 0::2])
    pos_enc[:, 1::2] = np.cos(pos_enc[:, 1::2])
    return pos_enc.astype(np.float32)


if __name__ == "__main__":
    # Forward takes only a bool flag; no tensor inputs. Key kept for convention.
    _ = jax.random.PRNGKey(0)

    # (seq, d, seq_tile) cases exercising: lane-packed path (D<128), lane-dense
    # direct path (D multiple of 128), packed path with row padding + slice
    # (seq % pack != 0), and a multi-block grid with a masked tail block.
    cases = [(8, 32, None), (16, 128, None), (8, 40, None), (84, 96, 8)]
    for max_seq_len, d_word_vec, seq_tile in cases:
        forward = make_pos_encoding(max_seq_len, d_word_vec, seq_tile=seq_tile)

        out = jax.block_until_ready(forward(True))
        assert out.shape == (max_seq_len, d_word_vec)
        ref = _numpy_reference(max_seq_len, d_word_vec)
        np.testing.assert_allclose(np.asarray(out), ref, atol=1e-4, rtol=1e-5)

        assert forward(False) is None
        assert forward(True) is out   # cached: no re-launch on repeat calls

    print("KERNEL_OK")
</pallas_src>

<mosaic_0001>
module attributes {stable_mosaic.version = 11 : i64} {
  func.func @_pos_enc_kernel(%arg0: i32, %arg1: memref<2x128xf32, #tpu.memory_space<vmem>>, %arg2: memref<2x128xf32, #tpu.memory_space<vmem>>, %arg3: memref<2x128xf32, #tpu.memory_space<vmem>>, %arg4: memref<2x128xf32, #tpu.memory_space<vmem>>) attributes {dimension_semantics = [#tpu.dimension_semantics<parallel>], iteration_bounds = array<i64: 1>, scalar_prefetch = 0 : i64, scratch_operands = 0 : i64, tpu.core_type = #tpu.core_type<tc>, window_params = [{pipeline_mode = #tpu.pipeline_mode<synchronous>, transform_indices = @transform_0, window_bounds = array<i64: 2, 128>}, {pipeline_mode = #tpu.pipeline_mode<synchronous>, transform_indices = @transform_1, window_bounds = array<i64: 2, 128>}, {pipeline_mode = #tpu.pipeline_mode<synchronous>, transform_indices = @transform_2, window_bounds = array<i64: 2, 128>}, {transform_indices = @transform_3, window_bounds = array<i64: 2, 128>}]} {
    %c0 = arith.constant 0 : index
    %c0_0 = arith.constant 0 : index
    %0 = vector.load %arg1[%c0, %c0_0] : memref<2x128xf32, #tpu.memory_space<vmem>>, vector<2x128xf32>
    %1 = vector.extract_strided_slice %0 {offsets = [0, 0], sizes = [1, 128], strides = [1, 1]} : vector<2x128xf32> to vector<1x128xf32>
    %2 = vector.extract_strided_slice %0 {offsets = [1, 0], sizes = [1, 128], strides = [1, 1]} : vector<2x128xf32> to vector<1x128xf32>
    %c2_i32 = arith.constant 2 : i32
    %3 = arith.muli %arg0, %c2_i32 : i32
    %4 = arith.sitofp %3 : i32 to f32
    %5 = vector.broadcast %4 : f32 to vector<1x128xf32>
    %6 = arith.mulf %5, %1 : vector<1x128xf32>
    %7 = arith.addf %6, %2 : vector<1x128xf32>
    %8 = math.sin %7 : vector<1x128xf32>
    %9 = math.cos %7 : vector<1x128xf32>
    %c0_1 = arith.constant 0 : index
    %c0_2 = arith.constant 0 : index
    %10 = vector.load %arg2[%c0_1, %c0_2] : memref<2x128xf32, #tpu.memory_space<vmem>>, vector<2x128xf32>
    %11 = vector.broadcast %9 : vector<1x128xf32> to vector<2x128xf32>
    %12 = arith.mulf %10, %11 : vector<2x128xf32>
    %c0_3 = arith.constant 0 : index
    %c0_4 = arith.constant 0 : index
    %13 = vector.load %arg3[%c0_3, %c0_4] : memref<2x128xf32, #tpu.memory_space<vmem>>, vector<2x128xf32>
    %14 = vector.broadcast %8 : vector<1x128xf32> to vector<2x128xf32>
    %15 = arith.mulf %13, %14 : vector<2x128xf32>
    %16 = arith.addf %12, %15 : vector<2x128xf32>
    %c0_5 = arith.constant 0 : index
    %c0_6 = arith.constant 0 : index
    %17 = vector.load %arg4[%c0_5, %c0_6] : memref<2x128xf32, #tpu.memory_space<vmem>>, vector<2x128xf32>
    tpu.vector_store %arg4[%c0_5, %c0_6], %16 {strides = array<i32>} : memref<2x128xf32, #tpu.memory_space<vmem>>, vector<2x128xf32>,
    return
  }
  func.func @transform_0(%arg0: i32) -> (i32, i32) {
    %c0_i32 = arith.constant 0 : i32
    %c0_i32_0 = arith.constant 0 : i32
    %c0_i32_1 = arith.constant 0 : i32
    return %c0_i32, %c0_i32_0 : i32, i32
  }
  func.func @transform_1(%arg0: i32) -> (i32, i32) {
    %c0_i32 = arith.constant 0 : i32
    %c0_i32_0 = arith.constant 0 : i32
    %c0_i32_1 = arith.constant 0 : i32
    return %c0_i32, %c0_i32_0 : i32, i32
  }
  func.func @transform_2(%arg0: i32) -> (i32, i32) {
    %c0_i32 = arith.constant 0 : i32
    %c0_i32_0 = arith.constant 0 : i32
    %c0_i32_1 = arith.constant 0 : i32
    return %c0_i32, %c0_i32_0 : i32, i32
  }
  func.func @transform_3(%arg0: i32) -> (i32, i32) {
    %c0_i32 = arith.constant 0 : i32
    %c0_i32_0 = arith.constant 0 : i32
    return %arg0, %c0_i32 : i32, i32
  }
}

</mosaic_0001>

<llo_original>
// kernel: tpu_custom_call.1
$region0: #{tpu_custom_call.1}
  #allocation0 [shape = 'u32[]', space=smem, size = 0x4, offset = 0x4, fixed_abs, tag = 'smem constant byte address 0x4 - core index']
  #allocation1 [shape = 'u32[144,128]{1,0:T(1,128)}', space=vmem, size = 0x12000, scoped, tag = 'internal scratch']
  %s0 = inlined_call_operand.hbm [shape: f32[2,128], index: 0, kind: input, shape index: {}]
  %s1 = inlined_call_operand.vmem [shape: f32[2,128], index: 1, kind: input, shape index: {}]
  %s2 = inlined_call_operand.vmem [shape: f32[2,128], index: 2, kind: input, shape index: {}]
  %s3 = inlined_call_operand.hbm [shape: f32[2,128], index: 3, kind: output, shape index: {}]
  %s4 = sld [smem:[#allocation0]]
  $region26: #{tpu_custom_call.1} parent=0
    _
  %s6 = ssub.s32 1, %s4
  %s7 = scalar_select 0, %s6, %s4
  $region1: #{tpu_custom_call.1} parent=0
    #allocation2 [shape = 'u8[1024]{0}', space=vmem, size = 0x400, scoped, tag = 'input window, operand 0, single buffered']
    #allocation3 [shape = 's32[1]{0}', space=sflag, size = 0x4, scoped, tag = 'scoped memory for tpu_custom_call.1']
    #allocation4 [shape = 's32[1]{0}', space=sflag, size = 0x4, scoped, tag = 'scoped memory for tpu_custom_call.1']
    #allocation5 [shape = 'u8[1024]{0}', space=vmem, size = 0x400, scoped, tag = 'output window, operand 0, single buffered']
    %8 = vsyncpa [#allocation3], 0
    %9 = vsyncpa [#allocation4], 0
    // Predicated region
    $region2: #{tpu_custom_call.1} parent=1 // pred_check
      _
    $region3: #{tpu_custom_call.1} parent=1 // pred_check_branch
      %11 = sbr.rel (0) target = $region5
    $region4: #{tpu_custom_call.1} parent=1 // pred_region
      %s13 = ssub.s32 32, 32
      %14 = vsyncadd [#allocation3], %s13
      %s16 = sshll.u32 [#allocation2], 4
      %s17 = int_to_ptr.vmem [resolvable:$true] %s16
      %19 = dma.hbm_to_vmem [thread:$0]  %s0, 32, %s17, [#allocation3]
    $region5: #{tpu_custom_call.1} parent=1 // pred_fallthru
      _
    // Predicated region
    $region6: #{tpu_custom_call.1} parent=1 // pred_check
      _
    $region7: #{tpu_custom_call.1} parent=1 // pred_check_branch
      %21 = sbr.rel (0) target = $region9
    $region8: #{tpu_custom_call.1} parent=1 // pred_region
      _
    $region9: #{tpu_custom_call.1} parent=1 // pred_fallthru
      _
    // Predicated region
    $region10: #{tpu_custom_call.1} parent=1 // pred_check
      _
    $region11: #{tpu_custom_call.1} parent=1 // pred_check_branch
      %23 = sbr.rel (0) target = $region13
    $region12: #{tpu_custom_call.1} parent=1 // pred_region
      _
    $region13: #{tpu_custom_call.1} parent=1 // pred_fallthru
      _
    // Predicated region
    $region14: #{tpu_custom_call.1} parent=1 // pred_check
      _
    $region15: #{tpu_custom_call.1} parent=1 // pred_check_branch
      %25 = sbr.rel (0) target = $region17
    $region16: #{tpu_custom_call.1} parent=1 // pred_region
      %26 = dma.done [#allocation3], 32
    $region17: #{tpu_custom_call.1} parent=1 // pred_fallthru
      _
    %v27 = vld [vmem:[#allocation2] sm:$0x3]
    %s28 = smul.u32 0, 2
    %s29 = scvt.s32.f32 %s28
    %v30 = vstv %s29
    %v31 = vmul.f32 %v30, %v27
    %v33 = vrot.slane %v27, 1
    %v35 = vadd.f32 %v31, %v33
    %v36 = vand.u32 2147483647, %v35
    %vm37 = vcmp.le.f32.partialorder %v36, 0.7853982
    %vm38 = vcmp.lt.s32.totalorder %v35, 0
    %v39 = vand.u32 %v35, 2139095040
    %v40 = vshrl.u32 %v39, 23
    %v41 = vsub.s32 %v40, 127
    %v42 = vand.u32 2147483647, %v35
    %v43 = vand.u32 %v42, 8388607
    %v44 = vor.u32 %v43, 8388608
    %v45 = vsub.s32 0, %v44
    %v46 = vadd.s32 %v41, 1
    %vm47 = vcmp.gt.s32.totalorder %v46, 0
    %v48 = vsel %vm47, %v46, 0
    %v49 = vshrl.u32 %v48, 5
    %v50 = vand.u32 %v48, 31
    %v51 = vsub.s32 32, %v50
    %v52 = vshrl.u32 683565275, %v51
    %v53 = vshll.u32 683565275, %v50
    %v54 = vshrl.u32 2475754826, %v51
    %v55 = vor.u32 %v53, %v54
    %v56 = vshll.u32 2475754826, %v50
    %v57 = vshrl.u32 2131351028, %v51
    %v58 = vor.u32 %v56, %v57
    %v59 = vshll.u32 2131351028, %v50
    %v60 = vshrl.u32 2102212464, %v51
    %v61 = vor.u32 %v59, %v60
    %v62 = vshll.u32 2102212464, %v50
    %v63 = vshrl.u32 920167782, %v51
    %v64 = vor.u32 %v62, %v63
    %v65 = vshll.u32 920167782, %v50
    %v66 = vshrl.u32 1326507024, %v51
    %v67 = vor.u32 %v65, %v66
    %vm68 = vcmp.lt.s32.totalorder %v49, 1
    %vm69 = vcmp.lt.s32.totalorder %v49, 2
    %vm70 = vcmp.lt.s32.totalorder %v49, 3
    %vm71 = vcmp.lt.s32.totalorder %v49, 4
    %v72 = vsel %vm68, %v52, %v55
    %v73 = vsel %vm71, %v61, 2102212464
    %v74 = vsel %vm70, %v58, %v73
    %v75 = vsel %vm69, %v72, %v74
    %v76 = vsel %vm68, %v55, %v58
    %v77 = vsel %vm71, %v64, 920167782
    %v78 = vsel %vm70, %v61, %v77
    %v79 = vsel %vm69, %v76, %v78
    %v80 = vsel %vm68, %v58, %v61
    %v81 = vsel %vm71, %v67, 1326507024
    %v82 = vsel %vm70, %v64, %v81
    %v83 = vsel %vm69, %v80, %v82
    %v84 = vshll.u32 %v44, 8
    %v85 = vmul.u32.u64.compose %v84, %v83
    %v86 = vextract.low.u32 %v85
    %v87 = vextract.high.u32 %v85
    %v88 = vmul.u32.u64.compose %v84, %v79
    %v89 = vextract.low.u32 %v88
    %v90 = vextract.high.u32 %v88
    %v91 = vmul.u32 %v84, %v75
    %v92 = vadd.s32 %v87, %v89
    %vm93 = vc.u32 %v87, %v89
    %v94 = vadd.s32 %v90, 1
    %v95 = vsel %vm93, %v94, %v90
    %v96 = vadd.s32 %v91, %v95
    %v97 = vadd.s32 %v96, 536870912
    %v98 = vshrl.u32 %v97, 30
    %v99 = vshll.u32 %v98, 30
    %v100 = vsub.s32 %v96, %v99
    %vm101 = vcmp.lt.s32.totalorder %v100, 0
    %v102 = vsub.s32 0, %v100
    %v103 = vsel %vm101, %v102, %v100
    %v104 = vclz %v103
    %v105 = vsub.s32 %v104, 2
    %vm106 = vcmp.gt.s32.totalorder 0, %v105
    %v107 = vsel %vm106, 0, %v105
    %v108 = vsub.s32 32, %v107
    %v109 = vshll.u32 %v100, %v107
    %v110 = vshrl.u32 %v92, %v108
    %v111 = vor.u32 %v109, %v110
    %v112 = vsub.s32 4294967266, %v107
    %v113 = vadd.s32 %v112, 127
    %v114 = vshll.u32 %v113, 23
    %v115 = vor.u32 4788187, %v114
    %v116 = vand.u32 2147483647, %v115
    %v118 = vcvt.s32.f32 %v111
    %v119 = vmul.f32 %v118, %v116
    %v120 = vxor.u32 %v119, 2147483648
    %v121 = vsel %vm38, %v120, %v119
    %v122 = vsub.s32 4, %v98
    %v123 = vsel %vm38, %v122, %v98
    %v124 = vsel %vm37, %v35, %v121
    %v125 = vsel %vm37, 0, %v123
    %v126 = vcosq.f32.pop %v124
    %v127 = vsinq.f32.pop %v124
    %vm128 = vweird.f32 %v35
    %v129 = vadd.s32 %v125, 3
    %v130 = vand.u32 %v129, 3
    %vm131 = vcmp.lt.s32.totalorder %v130, 2
    %vm132 = vcmp.eq.s32.totalorder %v130, 0
    %v133 = vxor.u32 %v127, 2147483648
    %v134 = vsel %vm132, %v126, %v133
    %vm135 = vcmp.eq.s32.totalorder %v130, 2
    %v136 = vxor.u32 %v126, 2147483648
    %v137 = vsel %vm135, %v136, %v127
    %v138 = vsel %vm131, %v134, %v137
    %v139 = vsel %vm128, nan, %v138
    %v140 = vand.u32 2147483647, %v35
    %vm141 = vcmp.le.f32.partialorder %v140, 0.7853982
    %vm142 = vcmp.lt.s32.totalorder %v35, 0
    %v143 = vand.u32 %v35, 2139095040
    %v144 = vshrl.u32 %v143, 23
    %v145 = vsub.s32 %v144, 127
    %v146 = vand.u32 2147483647, %v35
    %v147 = vand.u32 %v146, 8388607
    %v148 = vor.u32 %v147, 8388608
    %v149 = vsub.s32 0, %v148
    %v150 = vadd.s32 %v145, 1
    %vm151 = vcmp.gt.s32.totalorder %v150, 0
    %v152 = vsel %vm151, %v150, 0
    %v153 = vshrl.u32 %v152, 5
    %v154 = vand.u32 %v152, 31
    %v155 = vsub.s32 32, %v154
    %v156 = vshrl.u32 683565275, %v155
    %v157 = vshll.u32 683565275, %v154
    %v158 = vshrl.u32 2475754826, %v155
    %v159 = vor.u32 %v157, %v158
    %v160 = vshll.u32 2475754826, %v154
    %v161 = vshrl.u32 2131351028, %v155
    %v162 = vor.u32 %v160, %v161
    %v163 = vshll.u32 2131351028, %v154
    %v164 = vshrl.u32 2102212464, %v155
    %v165 = vor.u32 %v163, %v164
    %v166 = vshll.u32 2102212464, %v154
    %v167 = vshrl.u32 920167782, %v155
    %v168 = vor.u32 %v166, %v167
    %v169 = vshll.u32 920167782, %v154
    %v170 = vshrl.u32 1326507024, %v155
    %v171 = vor.u32 %v169, %v170
    %vm172 = vcmp.lt.s32.totalorder %v153, 1
    %vm173 = vcmp.lt.s32.totalorder %v153, 2
    %vm174 = vcmp.lt.s32.totalorder %v153, 3
    %vm175 = vcmp.lt.s32.totalorder %v153, 4
    %v176 = vsel %vm172, %v156, %v159
    %v177 = vsel %vm175, %v165, 2102212464
    %v178 = vsel %vm174, %v162, %v177
    %v179 = vsel %vm173, %v176, %v178
    %v180 = vsel %vm172, %v159, %v162
    %v181 = vsel %vm175, %v168, 920167782
    %v182 = vsel %vm174, %v165, %v181
    %v183 = vsel %vm173, %v180, %v182
    %v184 = vsel %vm172, %v162, %v165
    %v185 = vsel %vm175, %v171, 1326507024
    %v186 = vsel %vm174, %v168, %v185
    %v187 = vsel %vm173, %v184, %v186
    %v188 = vshll.u32 %v148, 8
    %v189 = vmul.u32.u64.compose %v188, %v187
    %v190 = vextract.low.u32 %v189
    %v191 = vextract.high.u32 %v189
    %v192 = vmul.u32.u64.compose %v188, %v183
    %v193 = vextract.low.u32 %v192
    %v194 = vextract.high.u32 %v192
    %v195 = vmul.u32 %v188, %v179
    %v196 = vadd.s32 %v191, %v193
    %vm197 = vc.u32 %v191, %v193
    %v198 = vadd.s32 %v194, 1
    %v199 = vsel %vm197, %v198, %v194
    %v200 = vadd.s32 %v195, %v199
    %v201 = vadd.s32 %v200, 536870912
    %v202 = vshrl.u32 %v201, 30
    %v203 = vshll.u32 %v202, 30
    %v204 = vsub.s32 %v200, %v203
    %vm205 = vcmp.lt.s32.totalorder %v204, 0
    %v206 = vsub.s32 0, %v204
    %v207 = vsel %vm205, %v206, %v204
    %v208 = vclz %v207
    %v209 = vsub.s32 %v208, 2
    %vm210 = vcmp.gt.s32.totalorder 0, %v209
    %v211 = vsel %vm210, 0, %v209
    %v212 = vsub.s32 32, %v211
    %v213 = vshll.u32 %v204, %v211
    %v214 = vshrl.u32 %v196, %v212
    %v215 = vor.u32 %v213, %v214
    %v216 = vsub.s32 4294967266, %v211
    %v217 = vadd.s32 %v216, 127
    %v218 = vshll.u32 %v217, 23
    %v219 = vor.u32 4788187, %v218
    %v220 = vand.u32 2147483647, %v219
    %v222 = vcvt.s32.f32 %v215
    %v223 = vmul.f32 %v222, %v220
    %v224 = vxor.u32 %v223, 2147483648
    %v225 = vsel %vm142, %v224, %v223
    %v226 = vsub.s32 4, %v202
    %v227 = vsel %vm142, %v226, %v202
    %v228 = vsel %vm141, %v35, %v225
    %v229 = vsel %vm141, 0, %v227
    %v230 = vcosq.f32.pop %v228
    %v231 = vsinq.f32.pop %v228
    %vm232 = vweird.f32 %v35
    %v233 = vand.u32 %v229, 3
    %vm234 = vcmp.lt.s32.totalorder %v233, 2
    %vm235 = vcmp.eq.s32.totalorder %v233, 0
    %v236 = vxor.u32 %v231, 2147483648
    %v237 = vsel %vm235, %v230, %v236
    %vm238 = vcmp.eq.s32.totalorder %v233, 2
    %v239 = vxor.u32 %v230, 2147483648
    %v240 = vsel %vm238, %v239, %v231
    %v241 = vsel %vm234, %v237, %v240
    %v242 = vsel %vm232, nan, %v241
    %v243 = vld [vmem:[%s1] sm:$0x3]
    %v244 = vlaneseq
    %v245 = vshrl.u32 %v244, 7
    %v246 = vsub.s32 0, %v245
    %v247 = vrot.slane %v242, %v246
    %v248 = vmul.f32 %v243, %v247
    %v249 = vld [vmem:[%s2] sm:$0x3]
    %v250 = vlaneseq
    %v251 = vshrl.u32 %v250, 7
    %v252 = vsub.s32 0, %v251
    %v253 = vrot.slane %v139, %v252
    %v254 = vmul.f32 %v249, %v253
    %v255 = vadd.f32 %v248, %v254
    %256 = vst [vmem:[#allocation5] sm:$0x3] %v255
    // Predicated region
    $region18: #{tpu_custom_call.1} parent=1 // pred_check
      _
    $region19: #{tpu_custom_call.1} parent=1 // pred_check_branch
      %258 = sbr.rel (0) target = $region21
    $region20: #{tpu_custom_call.1} parent=1 // pred_region
      %s260 = ssub.s32 32, 32
      %261 = vsyncadd [#allocation4], %s260
      %s263 = sshll.u32 [#allocation5], 4
      %s264 = int_to_ptr.vmem [resolvable:$true] %s263
      %266 = dma.vmem_to_hbm [thread:$0]  %s264, 32, %s3, [#allocation4]
    $region21: #{tpu_custom_call.1} parent=1 // pred_fallthru
      _
    // Predicated region
    $region22: #{tpu_custom_call.1} parent=1 // pred_check
      _
    $region23: #{tpu_custom_call.1} parent=1 // pred_check_branch
      %268 = sbr.rel (0) target = $region25
    $region24: #{tpu_custom_call.1} parent=1 // pred_region
      %269 = dma.done [#allocation4], 32
    $region25: #{tpu_custom_call.1} parent=1 // pred_fallthru
      _
    %270 = vsyncpa [#allocation3], 1
    %271 = vsyncpa [#allocation4], 1

</llo_original>
